<compile_context>
chip_gen: v5e
topology: v5e:2x2
jax: 0.10.0
libtpu: 0.0.40
codegen_flags: <defaults>
</compile_context>

<pallas_src>
import jax
import jax.numpy as jnp
import numpy as np
from jax import lax
from jax.experimental import pallas as pl
from jax.experimental.pallas import tpu as pltpu


def _round_up(x, m):
    return ((x + m - 1) // m) * m


def _vmem_capacity_bytes():
    try:
        info = pltpu.get_tpu_info()
        cap = getattr(info, "vmem_capacity_bytes", None)
        if cap:
            return int(cap)
    except Exception:
        pass
    return 128 << 20   # v5e / v6e default; v7x reports 64 MiB via get_tpu_info


# --------------------------------------------------------------------------
# Pallas kernel
# --------------------------------------------------------------------------
def _make_gcnn_kernel(Bt, L8, Cin, Cout, seg, Wcols, tap_offsets, use_trans,
                      shortcut_off, per_tap_dots):
    R = Bt * L8          # M-rows of the fused matmul

    def kernel(x_ref, mo_ref, w_ref, b_ref, y_ref):
        # x_ref : (Bt, Lp, Cin)   mask-premultiplied, zero-padded, channels-last, compute dtype
        # mo_ref: (Bt, 1, L8)     output mask (f32), lane-dense along the sequence
        # w_ref : (n_taps*Cin, Wcols)  or  (n_taps, Cin, Wcols)   packed weights
        # b_ref : (1, Wcols)      packed biases (f32)
        # y_ref : (Bt, Cout, L8)  output tile (f32), lane-dense along the sequence
        x = x_ref[...]

        def tap(off):                      # shifted (Bt, L8, Cin) view of the input
            return x[:, off:off + L8, :]

        if per_tap_dots:
            # Per-tap accumulating dots: no im2col buffer; tap shift t+1 overlaps dot t.
            acc = None
            for t, off in enumerate(tap_offsets):
                d = jnp.dot(tap(off).reshape(R, Cin), w_ref[t],
                            preferred_element_type=jnp.float32)
                acc = d if acc is None else acc + d
        else:
            # Small Cin: one fused im2col matmul (all conv1/conv2/trans taps at once).
            cols = jnp.concatenate([tap(off) for off in tap_offsets], axis=-1)
            acc = jnp.dot(cols.reshape(R, len(tap_offsets) * Cin), w_ref[...],
                          preferred_element_type=jnp.float32)

        acc = (acc + b_ref[...]).reshape(Bt, L8, Wcols)        # f32 accumulator

        c1 = acc[..., 0:Cout]                                  # conv1(X)
        gate = jax.nn.sigmoid(acc[..., seg:seg + Cout])        # sigmoid(conv2(X))
        if use_trans:
            shortcut = acc[..., 2 * seg:2 * seg + Cout]        # trans(X), folded 1x1 conv
        else:
            shortcut = tap(shortcut_off).astype(jnp.float32)   # X itself (residual)

        y = shortcut + gate * (c1 - shortcut)                  # (Bt, L8, Cout), f32
        y = jnp.transpose(y, (0, 2, 1))                        # (Bt, Cout, L8), lane-dense
        y_ref[...] = (y * mo_ref[...]).astype(y_ref.dtype)     # Y * attention_mask

    return kernel


# --------------------------------------------------------------------------
# Wrapper: PyTorch-layout in, PyTorch-layout out
# --------------------------------------------------------------------------
def gcnn_block_pallas(x_ncl, attention_mask, params, kernel_size, padding, dilation=1,
                      compute_dtype=jnp.float32, batch_tile=None):
    """x_ncl: (B, Cin, L); attention_mask: (B, L) -> Y (B, Cout, L) float32."""
    B, Cin, L = x_ncl.shape
    w1, b1, w2, b2, wt, bt = params          # torch layout: w (Cout, Cin, K), b (Cout,)
    Cout = w1.shape[0]
    K, pad, dil = kernel_size, padding, dilation
    use_trans = (Cin != Cout)

    # The PyTorch module only works for "same"-shaped convolutions (residual / mask).
    assert L + 2 * pad - dil * (K - 1) == L, "GCNN_block requires a 'same' convolution"

    # Conv tap offsets into the left-padded sequence. The trans 1x1 conv rides the tap
    # at offset == pad; only add an extra tap if it actually carries (non-zero) weight.
    conv_offsets = [k * dil for k in range(K)]
    tap_offsets = list(conv_offsets)
    trans_tap = None
    if use_trans:
        if pad in conv_offsets:
            trans_tap = conv_offsets.index(pad)
        else:
            tap_offsets.append(pad)
            trans_tap = len(tap_offsets) - 1
    n_taps = len(tap_offsets)
    shortcut_off = pad                        # residual path offset (used iff not use_trans)

    # ---- packed, 128-lane-aligned weights [conv1 | conv2 | (trans)] ------------------
    n_seg = 3 if use_trans else 2
    seg = _round_up(Cout, 128)                # segment stride -> acc slices are vreg-aligned
    Wcols = n_seg * seg
    w1t = jnp.transpose(w1, (2, 1, 0)).astype(jnp.float32)     # (K, Cin, Cout)
    w2t = jnp.transpose(w2, (2, 1, 0)).astype(jnp.float32)
    w_pack3 = jnp.zeros((n_taps, Cin, Wcols), jnp.float32)
    for t in range(K):
        w_pack3 = w_pack3.at[t, :, 0:Cout].set(w1t[t])
        w_pack3 = w_pack3.at[t, :, seg:seg + Cout].set(w2t[t])
    if use_trans:
        wtt = jnp.transpose(wt, (2, 1, 0)).astype(jnp.float32)[0]   # (Cin, Cout)
        w_pack3 = w_pack3.at[trans_tap, :, 2 * seg:2 * seg + Cout].set(wtt)
    w_pack3 = w_pack3.astype(compute_dtype)

    b_pack = jnp.zeros((1, Wcols), jnp.float32)
    b_pack = b_pack.at[0, 0:Cout].set(b1.astype(jnp.float32))
    b_pack = b_pack.at[0, seg:seg + Cout].set(b2.astype(jnp.float32))
    if use_trans:
        b_pack = b_pack.at[0, 2 * seg:2 * seg + Cout].set(bt.astype(jnp.float32))

    per_tap_dots = (Cin >= 128) and (Cin % 8 == 0)
    if per_tap_dots:
        w_pack = w_pack3                                        # (n_taps, Cin, Wcols)
        w_block, w_index_map = w_pack.shape, (lambda b: (0, 0, 0))
    else:
        w_pack = w_pack3.reshape(n_taps * Cin, Wcols)           # (n_taps*Cin, Wcols)
        w_block, w_index_map = w_pack.shape, (lambda b: (0, 0))

    # ---- layout: per-element stride Lp so every tap slice stays inside its element ----
    itemsize = jnp.dtype(compute_dtype).itemsize
    sub = 8 * (4 // itemsize)                 # sublane packing: 8 rows f32, 16 rows bf16
    L8 = _round_up(L, 8)
    max_off = max(tap_offsets + [shortcut_off])
    Lp = _round_up(L8 + max_off, sub)

    # ---- generation-aware tile sizing (VMEM budget; keep both v7x cores busy) ---------
    phys = _vmem_capacity_bytes()
    scoped_cap = (phys * 3) // 4
    per_b = (2 * Lp * Cin * itemsize          # x tile (double-buffered)
             + 2 * L8 * 4                     # output mask tile
             + 2 * Cout * L8 * 4              # output tile
             + 2 * L8 * n_taps * Cin * itemsize   # tap views / im2col
             + L8 * Wcols * 4                 # f32 accumulator
             + 3 * L8 * Cout * 4)             # epilogue temporaries
    fixed = 2 * n_taps * Cin * Wcols * itemsize + 2 * Wcols * 4   # resident weights/biases
    budget = int(scoped_cap * 0.8)
    bt_vmem = max(1, (budget - fixed) // max(1, per_b))
    bt_rows = max(1, 2048 // L8)              # target ~2K matmul rows per grid step
    bt_cores = max(1, (B + 1) // 2)           # nb >= 2 so v7x's 2nd TensorCore gets work
    if batch_tile is not None:
        Bt = max(1, min(int(batch_tile), B))
    else:
        Bt = max(1, min(B, bt_vmem, bt_rows, bt_cores))
    nb = pl.cdiv(B, Bt)
    B_pad = nb * Bt
    vmem_limit = int(min(scoped_cap, max(32 << 20, 1.25 * (fixed + Bt * per_b))))

    # ---- build inputs: mask pre-multiplied into x (fuses into the pad), no mask stream -
    mask_f = attention_mask.astype(jnp.float32)                             # (B, L)
    x_blc = (jnp.transpose(x_ncl, (0, 2, 1)).astype(jnp.float32)
             * mask_f[:, :, None]).astype(compute_dtype)                    # (B, L, Cin)
    x_p = jnp.zeros((B_pad, Lp, Cin), compute_dtype).at[:B, pad:pad + L, :].set(x_blc)
    m_out = jnp.zeros((B_pad, 1, L8), jnp.float32).at[:B, 0, :L].set(mask_f)

    kernel = _make_gcnn_kernel(Bt, L8, Cin, Cout, seg, Wcols, tap_offsets, use_trans,
                               shortcut_off, per_tap_dots)

    out = pl.pallas_call(
        kernel,
        out_shape=jax.ShapeDtypeStruct((B_pad, Cout, L8), jnp.float32),
        grid_spec=pltpu.PrefetchScalarGridSpec(
            num_scalar_prefetch=0,
            grid=(nb,),
            in_specs=[
                pl.BlockSpec((Bt, Lp, Cin), lambda b: (b, 0, 0)),   # masked input
                pl.BlockSpec((Bt, 1, L8), lambda b: (b, 0, 0)),     # output mask
                pl.BlockSpec(w_block, w_index_map),                 # resident weights
                pl.BlockSpec((1, Wcols), lambda b: (0, 0)),         # resident biases
            ],
            out_specs=pl.BlockSpec((Bt, Cout, L8), lambda b: (b, 0, 0)),
        ),
        compiler_params=pltpu.CompilerParams(
            dimension_semantics=("parallel",),
            vmem_limit_bytes=vmem_limit),
    )(x_p, m_out, w_pack, b_pack)

    return out[:B, :, :L]                     # already (B, Cout, L): no wrapper transpose


# --------------------------------------------------------------------------
# Pure-JAX reference (mirrors the PyTorch forward)
# --------------------------------------------------------------------------
def gcnn_block_ref(x_ncl, attention_mask, params, kernel_size, padding, dilation=1):
    w1, b1, w2, b2, wt, bt = params
    Cin = x_ncl.shape[1]
    Cout = w1.shape[0]
    use_trans = (Cin != Cout)
    mask = attention_mask.astype(jnp.float32)
    xm = x_ncl * mask[:, None, :]

    def conv(x, w, b, pad, dil):
        y = lax.conv_general_dilated(
            x, w, window_strides=(1,), padding=[(pad, pad)], rhs_dilation=(dil,),
            dimension_numbers=("NCH", "OIH", "NCH"), precision=lax.Precision.HIGHEST)
        return y + b[None, :, None]

    gate = jax.nn.sigmoid(conv(xm, w2, b2, padding, dilation))
    c1 = conv(xm, w1, b1, padding, dilation)
    shortcut = conv(xm, wt, bt, 0, 1) if use_trans else xm
    y = shortcut * (1 - gate) + c1 * gate
    return y * mask[:, None, :]


# --------------------------------------------------------------------------
# Deterministic parameter init (synthetic; shapes per nn.Conv1d in __init__)
# --------------------------------------------------------------------------
def init_params(key, Cin, Cout, K):
    ks = jax.random.split(key, 6)
    scale = 0.2
    w1 = scale * jax.random.normal(ks[0], (Cout, Cin, K), jnp.float32)
    b1 = scale * jax.random.normal(ks[1], (Cout,), jnp.float32)
    w2 = scale * jax.random.normal(ks[2], (Cout, Cin, K), jnp.float32)
    b2 = scale * jax.random.normal(ks[3], (Cout,), jnp.float32)
    wt = scale * jax.random.normal(ks[4], (Cout, Cin, 1), jnp.float32)  # used iff Cin != Cout
    bt = scale * jax.random.normal(ks[5], (Cout,), jnp.float32)
    return (w1, b1, w2, b2, wt, bt)


if __name__ == "__main__":
    key = jax.random.PRNGKey(0)
    B, L, K, PAD, DIL = 2, 16, 3, 1, 1

    kx, kx2, kx5, kp1, kp2, kp3, kp5 = jax.random.split(key, 7)
    lengths = jnp.array([16, 10], dtype=jnp.int32)
    attention_mask = (jnp.arange(L)[None, :] < lengths[:, None]).astype(jnp.float32)  # (B, L)

    # ---- case 1: input_channel == output_channel (residual path uses X itself) ----
    Cin = Cout = 8
    x = jax.random.normal(kx, (B, Cin, L), jnp.float32)
    params = init_params(kp1, Cin, Cout, K)
    y = jax.block_until_ready(gcnn_block_pallas(x, attention_mask, params, K, PAD, DIL))
    y_ref = gcnn_block_ref(x, attention_mask, params, K, PAD, DIL)
    np.testing.assert_allclose(np.asarray(y), np.asarray(y_ref), rtol=1e-4, atol=1e-5)

    # ---- case 2: input_channel != output_channel (fused 1x1 `trans` path) ----
    Cin2, Cout2 = 8, 16
    x2 = jax.random.normal(kx2, (B, Cin2, L), jnp.float32)
    params2 = init_params(kp2, Cin2, Cout2, K)
    y2 = jax.block_until_ready(gcnn_block_pallas(x2, attention_mask, params2, K, PAD, DIL))
    y2_ref = gcnn_block_ref(x2, attention_mask, params2, K, PAD, DIL)
    np.testing.assert_allclose(np.asarray(y2), np.asarray(y2_ref), rtol=1e-4, atol=1e-5)

    # ---- case 3: dilation = 2, padding = 2 (tap offsets 0 / 2 / 4) ----
    params3 = init_params(kp3, Cin, Cout, K)
    y3 = jax.block_until_ready(gcnn_block_pallas(x, attention_mask, params3, K, 2, 2))
    y3_ref = gcnn_block_ref(x, attention_mask, params3, K, 2, 2)
    np.testing.assert_allclose(np.asarray(y3), np.asarray(y3_ref), rtol=1e-4, atol=1e-5)

    # ---- case 4: bf16 matmul inputs (v6e/v7x MXU path), f32 accumulation/gating ----
    y4 = jax.block_until_ready(
        gcnn_block_pallas(x2, attention_mask, params2, K, PAD, DIL,
                          compute_dtype=jnp.bfloat16))
    np.testing.assert_allclose(np.asarray(y4), np.asarray(y2_ref), rtol=5e-2, atol=5e-2)

    # ---- case 5: Cin >= 128 -> per-tap accumulating-dot path (no im2col concat) ----
    Cin5 = Cout5 = 128
    x5 = jax.random.normal(kx5, (B, Cin5, L), jnp.float32)
    params5 = init_params(kp5, Cin5, Cout5, K)
    y5 = jax.block_until_ready(gcnn_block_pallas(x5, attention_mask, params5, K, PAD, DIL))
    y5_ref = gcnn_block_ref(x5, attention_mask, params5, K, PAD, DIL)
    np.testing.assert_allclose(np.asarray(y5), np.asarray(y5_ref), rtol=1e-4, atol=1e-4)

    print("KERNEL_OK")
</pallas_src>

<mosaic_0001>
module attributes {stable_mosaic.version = 11 : i64} {
  func.func @kernel(%arg0: i32, %arg1: memref<1x24x8xf32, #tpu.memory_space<vmem>>, %arg2: memref<1x1x16xf32, #tpu.memory_space<vmem>>, %arg3: memref<24x256xf32, #tpu.memory_space<vmem>>, %arg4: memref<1x256xf32, #tpu.memory_space<vmem>>, %arg5: memref<1x8x16xf32, #tpu.memory_space<vmem>>) attributes {dimension_semantics = [#tpu.dimension_semantics<parallel>], iteration_bounds = array<i64: 2>, scalar_prefetch = 0 : i64, scratch_operands = 0 : i64, tpu.core_type = #tpu.core_type<tc>, window_params = [{transform_indices = @transform_0, window_bounds = array<i64: 1, 24, 8>}, {transform_indices = @transform_1, window_bounds = array<i64: 1, 1, 16>}, {pipeline_mode = #tpu.pipeline_mode<synchronous>, transform_indices = @transform_2, window_bounds = array<i64: 24, 256>}, {pipeline_mode = #tpu.pipeline_mode<synchronous>, transform_indices = @transform_3, window_bounds = array<i64: 1, 256>}, {transform_indices = @transform_4, window_bounds = array<i64: 1, 8, 16>}]} {
    %c0 = arith.constant 0 : index
    %c0_0 = arith.constant 0 : index
    %c0_1 = arith.constant 0 : index
    %0 = vector.load %arg1[%c0, %c0_0, %c0_1] : memref<1x24x8xf32, #tpu.memory_space<vmem>>, vector<1x24x8xf32>
    %1 = vector.extract_strided_slice %0 {offsets = [0, 0, 0], sizes = [1, 16, 8], strides = [1, 1, 1]} : vector<1x24x8xf32> to vector<1x16x8xf32>
    %2 = vector.extract_strided_slice %0 {offsets = [0, 1, 0], sizes = [1, 16, 8], strides = [1, 1, 1]} : vector<1x24x8xf32> to vector<1x16x8xf32>
    %3 = vector.extract_strided_slice %0 {offsets = [0, 2, 0], sizes = [1, 16, 8], strides = [1, 1, 1]} : vector<1x24x8xf32> to vector<1x16x8xf32>
    %4 = tpu.concatenate %1, %2, %3 in 2 : vector<1x16x8xf32>, vector<1x16x8xf32>, vector<1x16x8xf32> -> vector<1x16x24xf32>
    %5 = vector.shape_cast %4 : vector<1x16x24xf32> to vector<16x24xf32>
    %c0_2 = arith.constant 0 : index
    %c0_3 = arith.constant 0 : index
    %6 = vector.load %arg3[%c0_2, %c0_3] : memref<24x256xf32, #tpu.memory_space<vmem>>, vector<24x256xf32>
    %cst = arith.constant dense<0.000000e+00> : vector<16x256xf32>
    %7 = tpu.matmul %5, %6, %cst {dimension_numbers = #tpu.dot_dimension_numbers<[1], [0], [0], [1], [0, 0, 1, 1], [], []>} : vector<16x24xf32>, vector<24x256xf32>, vector<16x256xf32> -> vector<16x256xf32>
    %c0_4 = arith.constant 0 : index
    %c0_5 = arith.constant 0 : index
    %8 = vector.load %arg4[%c0_4, %c0_5] : memref<1x256xf32, #tpu.memory_space<vmem>>, vector<1x256xf32>
    %9 = vector.broadcast %8 : vector<1x256xf32> to vector<16x256xf32>
    %10 = arith.addf %7, %9 : vector<16x256xf32>
    %11 = vector.shape_cast %10 : vector<16x256xf32> to vector<1x16x256xf32>
    %12 = vector.extract_strided_slice %11 {offsets = [0, 0, 0], sizes = [1, 16, 8], strides = [1, 1, 1]} : vector<1x16x256xf32> to vector<1x16x8xf32>
    %13 = vector.extract_strided_slice %11 {offsets = [0, 0, 128], sizes = [1, 16, 8], strides = [1, 1, 1]} : vector<1x16x256xf32> to vector<1x16x8xf32>
    %14 = arith.negf %13 : vector<1x16x8xf32>
    %15 = math.exp %14 : vector<1x16x8xf32>
    %cst_6 = arith.constant 1.000000e+00 : f32
    %16 = vector.broadcast %cst_6 : f32 to vector<1x16x8xf32>
    %17 = arith.addf %16, %15 : vector<1x16x8xf32>
    %18 = arith.divf %16, %17 : vector<1x16x8xf32>
    %19 = vector.extract_strided_slice %0 {offsets = [0, 1, 0], sizes = [1, 16, 8], strides = [1, 1, 1]} : vector<1x24x8xf32> to vector<1x16x8xf32>
    %20 = arith.subf %12, %19 : vector<1x16x8xf32>
    %21 = arith.mulf %18, %20 : vector<1x16x8xf32>
    %22 = arith.addf %19, %21 : vector<1x16x8xf32>
    %23 = tpu.transpose %22, [0, 2, 1] : vector<1x16x8xf32> -> vector<1x8x16xf32>
    %c0_7 = arith.constant 0 : index
    %c0_8 = arith.constant 0 : index
    %c0_9 = arith.constant 0 : index
    %24 = vector.load %arg2[%c0_7, %c0_8, %c0_9] : memref<1x1x16xf32, #tpu.memory_space<vmem>>, vector<1x1x16xf32>
    %25 = vector.broadcast %24 : vector<1x1x16xf32> to vector<1x8x16xf32>
    %26 = arith.mulf %23, %25 : vector<1x8x16xf32>
    %c0_10 = arith.constant 0 : index
    %c0_11 = arith.constant 0 : index
    %c0_12 = arith.constant 0 : index
    %27 = vector.load %arg5[%c0_10, %c0_11, %c0_12] : memref<1x8x16xf32, #tpu.memory_space<vmem>>, vector<1x8x16xf32>
    tpu.vector_store %arg5[%c0_10, %c0_11, %c0_12], %26 {strides = array<i32>} : memref<1x8x16xf32, #tpu.memory_space<vmem>>, vector<1x8x16xf32>,
    return
  }
  func.func @transform_0(%arg0: i32) -> (i32, i32, i32) {
    %c0_i32 = arith.constant 0 : i32
    %c0_i32_0 = arith.constant 0 : i32
    %c0_i32_1 = arith.constant 0 : i32
    return %arg0, %c0_i32, %c0_i32_0 : i32, i32, i32
  }
  func.func @transform_1(%arg0: i32) -> (i32, i32, i32) {
    %c0_i32 = arith.constant 0 : i32
    %c0_i32_0 = arith.constant 0 : i32
    %c0_i32_1 = arith.constant 0 : i32
    return %arg0, %c0_i32, %c0_i32_0 : i32, i32, i32
  }
  func.func @transform_2(%arg0: i32) -> (i32, i32) {
    %c0_i32 = arith.constant 0 : i32
    %c0_i32_0 = arith.constant 0 : i32
    %c0_i32_1 = arith.constant 0 : i32
    return %c0_i32, %c0_i32_0 : i32, i32
  }
  func.func @transform_3(%arg0: i32) -> (i32, i32) {
    %c0_i32 = arith.constant 0 : i32
    %c0_i32_0 = arith.constant 0 : i32
    %c0_i32_1 = arith.constant 0 : i32
    return %c0_i32, %c0_i32_0 : i32, i32
  }
  func.func @transform_4(%arg0: i32) -> (i32, i32, i32) {
    %c0_i32 = arith.constant 0 : i32
    %c0_i32_0 = arith.constant 0 : i32
    %c0_i32_1 = arith.constant 0 : i32
    return %arg0, %c0_i32, %c0_i32_0 : i32, i32, i32
  }
}

</mosaic_0001>

<llo_original>
// kernel: tpu_custom_call.1
$region0: #{tpu_custom_call.1}
  #allocation0 [shape = 'u32[]', space=smem, size = 0x4, offset = 0x4, fixed_abs, tag = 'smem constant byte address 0x4 - core index']
  #allocation1 [shape = 'u32[72,128]{1,0:T(1,128)}', space=vmem, size = 0x9000, scoped, tag = 'internal scratch']
  %s0 = inlined_call_operand.vmem [shape: f32[2,24,8], index: 0, kind: input, shape index: {}]
  %s1 = inlined_call_operand.vmem [shape: f32[2,1,16], index: 1, kind: input, shape index: {}]
  %s2 = inlined_call_operand.vmem [shape: f32[24,256], index: 2, kind: input, shape index: {}]
  %s3 = inlined_call_operand.vmem [shape: f32[1,256], index: 3, kind: input, shape index: {}]
  %s4 = inlined_call_operand.hbm [shape: f32[2,8,16], index: 4, kind: output, shape index: {}]
  %s5 = sld [smem:[#allocation0]]
  $region49: #{tpu_custom_call.1} parent=0
    _
  %s7 = ssub.s32 1, %s5
  %s8 = scalar_select 0, %s7, %s5
  $region1: #{tpu_custom_call.1} parent=0
    #allocation2 [shape = 'u8[8192]{0}', space=vmem, size = 0x2000, scoped, tag = 'output window, operand 0']
    #allocation3 [shape = 's32[2]{0}', space=sflag, size = 0x8, scoped, tag = 'scoped memory for tpu_custom_call.1']
    %9 = vsyncpa [#allocation3], 0
    %s10 = scalar_lea.sflag [#allocation3], 1
    %11 = vsyncpa %s10, 0
    loop: start=0, step=1, limit=4
    $region2: #{tpu_custom_call.1} parent=1 // loop_pre_header
      _
    $region3: #{tpu_custom_call.1} parent=1 // loop_header
      %s13 = sphi 0, %s17
      %p14 = scmp.ge.s32.totalorder %s13, 4
      %s23 = sphi 0, %s25
      %s26 = sphi 0, %s23
      %s27 = sphi 0, %s26
      %s43 = sphi 0, %s27
      %s49 = sphi 0, %s51
      %s52 = sphi 0, %s49
      %s53 = sphi 0, %s52
      %s69 = sphi 0, %s53
      %s73 = sphi 0, %s73
      %s75 = sphi 0, %s73
      %s76 = sphi 0, %s75
      %s90 = sphi 0, %s76
      %s94 = sphi 0, %s94
      %s96 = sphi 0, %s94
      %s97 = sphi 0, %s96
      %s111 = sphi 0, %s97
      %s117 = sphi 0, %s119
      %s120 = sphi 0, %s117
      %s121 = sphi 0, %s120
      %s137 = sphi 0, %s121
    $region4: #{tpu_custom_call.1} parent=1 // loop_header_branch
      %16 = sbr.rel (%p14) target = $region8
    $region5: #{tpu_custom_call.1} parent=1 // loop_body
      %s18 = ssub.s32 %s13, 1
      %s19 = ssub.s32 %s13, 2
      %s20 = sadd.s32 %s13, 1
      %s21 = ssub.s32 %s13, %s20
      %p22 = scmp.eq.s32.totalorder %s21, 0
      %s24 = sadd.s32 %s23, 1
      %s25 = scalar_select %p22, %s23, %s24
      %p28 = pneg %p22
      %p29 = scmp.eq.s32.totalorder %s13, 1
      %p30 = por %p28, %p29
      %p31 = scmp.ne.s32.totalorder %s23, %s26
      %p32 = scmp.eq.s32.totalorder %s13, 0
      %p33 = por %p31, %p32
      %p34 = scmp.ne.s32.totalorder %s23, %s26
      %p35 = scmp.eq.s32.totalorder %s18, 1
      %p36 = por %p34, %p35
      %p37 = scmp.ne.s32.totalorder %s26, %s27
      %p38 = scmp.eq.s32.totalorder %s18, 0
      %p39 = por %p37, %p38
      %p40 = scmp.ne.s32.totalorder %s26, %s27
      %p41 = scmp.eq.s32.totalorder %s19, 1
      %p42 = por %p40, %p41
      %p44 = scmp.ne.s32.totalorder %s27, %s43
      %p45 = scmp.eq.s32.totalorder %s19, 0
      %p46 = por %p44, %p45
      %s47 = ssub.s32 %s13, %s20
      %p48 = scmp.eq.s32.totalorder %s47, 0
      %s50 = sadd.s32 %s49, 1
      %s51 = scalar_select %p48, %s49, %s50
      %p54 = pneg %p48
      %p55 = scmp.eq.s32.totalorder %s13, 1
      %p56 = por %p54, %p55
      %p57 = scmp.ne.s32.totalorder %s49, %s52
      %p58 = scmp.eq.s32.totalorder %s13, 0
      %p59 = por %p57, %p58
      %p60 = scmp.ne.s32.totalorder %s49, %s52
      %p61 = scmp.eq.s32.totalorder %s18, 1
      %p62 = por %p60, %p61
      %p63 = scmp.ne.s32.totalorder %s52, %s53
      %p64 = scmp.eq.s32.totalorder %s18, 0
      %p65 = por %p63, %p64
      %p66 = scmp.ne.s32.totalorder %s52, %s53
      %p67 = scmp.eq.s32.totalorder %s19, 1
      %p68 = por %p66, %p67
      %p70 = scmp.ne.s32.totalorder %s53, %s69
      %p71 = scmp.eq.s32.totalorder %s19, 0
      %p72 = por %p70, %p71
      %s74 = sadd.s32 %s73, 1
      %p77 = scmp.eq.s32.totalorder %s13, 1
      %p78 = scmp.ne.s32.totalorder %s73, %s75
      %p79 = scmp.eq.s32.totalorder %s13, 0
      %p80 = por %p78, %p79
      %p81 = scmp.ne.s32.totalorder %s73, %s75
      %p82 = scmp.eq.s32.totalorder %s18, 1
      %p83 = por %p81, %p82
      %p84 = scmp.ne.s32.totalorder %s75, %s76
      %p85 = scmp.eq.s32.totalorder %s18, 0
      %p86 = por %p84, %p85
      %p87 = scmp.ne.s32.totalorder %s75, %s76
      %p88 = scmp.eq.s32.totalorder %s19, 1
      %p89 = por %p87, %p88
      %p91 = scmp.ne.s32.totalorder %s76, %s90
      %p92 = scmp.eq.s32.totalorder %s19, 0
      %p93 = por %p91, %p92
      %s95 = sadd.s32 %s94, 1
      %p98 = scmp.eq.s32.totalorder %s13, 1
      %p99 = scmp.ne.s32.totalorder %s94, %s96
      %p100 = scmp.eq.s32.totalorder %s13, 0
      %p101 = por %p99, %p100
      %p102 = scmp.ne.s32.totalorder %s94, %s96
      %p103 = scmp.eq.s32.totalorder %s18, 1
      %p104 = por %p102, %p103
      %p105 = scmp.ne.s32.totalorder %s96, %s97
      %p106 = scmp.eq.s32.totalorder %s18, 0
      %p107 = por %p105, %p106
      %p108 = scmp.ne.s32.totalorder %s96, %s97
      %p109 = scmp.eq.s32.totalorder %s19, 1
      %p110 = por %p108, %p109
      %p112 = scmp.ne.s32.totalorder %s97, %s111
      %p113 = scmp.eq.s32.totalorder %s19, 0
      %p114 = por %p112, %p113
      %s115 = ssub.s32 %s13, %s20
      %p116 = scmp.eq.s32.totalorder %s115, 0
      %s118 = sadd.s32 %s117, 1
      %s119 = scalar_select %p116, %s117, %s118
      %p122 = pneg %p116
      %p123 = scmp.eq.s32.totalorder %s13, 1
      %p124 = por %p122, %p123
      %p125 = scmp.ne.s32.totalorder %s117, %s120
      %p126 = scmp.eq.s32.totalorder %s13, 0
      %p127 = por %p125, %p126
      %p128 = scmp.ne.s32.totalorder %s117, %s120
      %p129 = scmp.eq.s32.totalorder %s18, 1
      %p130 = por %p128, %p129
      %p131 = scmp.ne.s32.totalorder %s120, %s121
      %p132 = scmp.eq.s32.totalorder %s18, 0
      %p133 = por %p131, %p132
      %p134 = scmp.ne.s32.totalorder %s120, %s121
      %p135 = scmp.eq.s32.totalorder %s19, 1
      %p136 = por %p134, %p135
      %p138 = scmp.ne.s32.totalorder %s121, %s137
      %p139 = scmp.eq.s32.totalorder %s19, 0
      %p140 = por %p138, %p139
      %p141 = scmp.le.s32.totalorder 1, %s13
      %p142 = scmp.lt.s32.totalorder %s13, 3
      %p143 = pnand %p141, %p142
      %p144 = pneg %p143
      // Predicated region
      $region9: #{tpu_custom_call.1} parent=5 // pred_check
        _
      $region10: #{tpu_custom_call.1} parent=5 // pred_check_branch
        %146 = sbr.rel (%p143) target = $region12
      $region11: #{tpu_custom_call.1} parent=5 // pred_region
        %s147 = ssub.s32 %s13, 1
        // Predicated region
        $region13: #{tpu_custom_call.1} parent=11 // pred_check
          %p148 = pneg %p86
        $region14: #{tpu_custom_call.1} parent=11 // pred_check_branch
          %150 = sbr.rel (%p148) target = $region16
        $region15: #{tpu_custom_call.1} parent=11 // pred_region
          _
        $region16: #{tpu_custom_call.1} parent=11 // pred_fallthru
          _
        // Predicated region
        $region17: #{tpu_custom_call.1} parent=11 // pred_check
          %p151 = pneg %p107
        $region18: #{tpu_custom_call.1} parent=11 // pred_check_branch
          %153 = sbr.rel (%p151) target = $region20
        $region19: #{tpu_custom_call.1} parent=11 // pred_region
          _
        $region20: #{tpu_custom_call.1} parent=11 // pred_fallthru
          _
      $region12: #{tpu_custom_call.1} parent=5 // pred_fallthru
        _
      %p154 = scmp.lt.s32.totalorder %s13, 2
      // Predicated region
      $region21: #{tpu_custom_call.1} parent=5 // pred_check
        %p155 = pneg %p154
      $region22: #{tpu_custom_call.1} parent=5 // pred_check_branch
        %157 = sbr.rel (%p155) target = $region24
      $region23: #{tpu_custom_call.1} parent=5 // pred_region
        // Predicated region
        $region25: #{tpu_custom_call.1} parent=23 // pred_check
          %p158 = pneg %p33
        $region26: #{tpu_custom_call.1} parent=23 // pred_check_branch
          %160 = sbr.rel (%p158) target = $region28
        $region27: #{tpu_custom_call.1} parent=23 // pred_region
          %p161 = scmp.lt.s32.totalorder %s13, 1
          %s162 = scalar_select %p161, %s13, 1
          %s163 = smul.addr %s162, 3
          %s164 = smul.addr %s163, 8
          %s165 = scalar_lea.vmem %s0, %s164
        $region28: #{tpu_custom_call.1} parent=23 // pred_fallthru
          _
        // Predicated region
        $region29: #{tpu_custom_call.1} parent=23 // pred_check
          %p166 = pneg %p59
        $region30: #{tpu_custom_call.1} parent=23 // pred_check_branch
          %168 = sbr.rel (%p166) target = $region32
        $region31: #{tpu_custom_call.1} parent=23 // pred_region
          %p169 = scmp.lt.s32.totalorder %s13, 1
          %s170 = scalar_select %p169, %s13, 1
          %s171 = scalar_lea.vmem %s1, %s170
        $region32: #{tpu_custom_call.1} parent=23 // pred_fallthru
          _
      $region24: #{tpu_custom_call.1} parent=5 // pred_fallthru
        _
      %p172 = scmp.le.s32.totalorder 1, %s13
      %p173 = scmp.lt.s32.totalorder %s13, 3
      %p174 = pnand %p172, %p173
      %p175 = pneg %p174
      // Predicated region
      $region33: #{tpu_custom_call.1} parent=5 // pred_check
        _
      $region34: #{tpu_custom_call.1} parent=5 // pred_check_branch
        %177 = sbr.rel (%p174) target = $region36
      $region35: #{tpu_custom_call.1} parent=5 // pred_region
        %s178 = ssub.s32 %s13, 1
        %p179 = scmp.lt.s32.totalorder %s18, 1
        %s180 = scalar_select %p179, %s18, 1
        %s181 = smul.addr %s180, 3
        %s182 = smul.addr %s181, 8
        %s183 = scalar_lea.vmem %s0, %s182
        %p184 = pneg %p39
        %p185 = pneg %p36
        %p186 = scmp.lt.s32.totalorder %s18, 1
        %s187 = scalar_select %p186, %s18, 1
        %s188 = scalar_lea.vmem %s1, %s187
        %p189 = pneg %p65
        %p190 = pneg %p62
        %p191 = pneg %p86
        %p192 = pneg %p83
        %p193 = pneg %p107
        %p194 = pneg %p104
        %p195 = pneg %p133
        %p196 = pneg %p130
        %s197 = sand.u32 %s120, 1
        %s198 = scalar_lea.sflag [#allocation3], %s197
        %s199 = sand.u32 %s120, 1
        %s200 = smul.addr %s199, 8
        %s201 = scalar_lea.vmem [#allocation2], %s200
        %p202 = scmp.lt.s32.totalorder %s18, 1
        %s203 = scalar_select %p202, %s18, 1
        %s204 = smul.addr %s203, 3
        %s205 = smul.addr %s204, 8
        %s206 = scalar_lea.vmem %s0, %s205
        %p207 = scmp.lt.s32.totalorder %s18, 1
        %s208 = scalar_select %p207, %s18, 1
        %s209 = scalar_lea.vmem %s1, %s208
        %v210 = vld [vmem:[%s206] sm:$0xff]
        %v211 = vld [vmem:[%s206 + $0x8] sm:$0xff]
        %v212 = vld [vmem:[%s206 + $0x10] sm:$0xff]
        %vm216 = vcmask 1046528
        %v217 = vrot.slane %v210, 1
        %v218 = vrot.slane %v211, 1
        %v219 = vsel %vm216, %v217, %v218
        %v220 = vrot.slane %v212, 1
        %v221 = vsel %vm216, %v218, %v220
        %222 = vrot.lane.b32.xlu0 %v219, 8
        %v223 = vpop.permute.xlu0 %222
        %224 = vrot.lane.b32.xlu0 %v221, 8
        %v225 = vpop.permute.xlu0 %224
        %vm228 = vcmask 1045504
        %v229 = vrot.slane %v210, 2
        %v230 = vrot.slane %v211, 2
        %v231 = vsel %vm228, %v229, %v230
        %v232 = vrot.slane %v212, 2
        %v233 = vsel %vm228, %v230, %v232
        %234 = vrot.lane.b32.xlu0 %v231, 16
        %v235 = vpop.permute.xlu0 %234
        %236 = vrot.lane.b32.xlu0 %v233, 16
        %v237 = vpop.permute.xlu0 %236
        %vm240 = vcmask 64512
        %v241 = vsel %vm240, %v210, %v223
        %v242 = vsel %vm240, %v211, %v225
        %vm243 = vcmask 130048
        %v244 = vsel %vm243, %v241, %v235
        %v245 = vsel %vm243, %v242, %v237
        %v246 = vld [vmem:[%s2] sm:$0xff]
        %v247 = vld [vmem:[%s2 + $0x8] sm:$0xff]
        %v248 = vld [vmem:[%s2 + $0x10] sm:$0xff]
        %v249 = vld [vmem:[%s2 + $0x18] sm:$0xff]
        %v250 = vld [vmem:[%s2 + $0x20] sm:$0xff]
        %v251 = vld [vmem:[%s2 + $0x28] sm:$0xff]
        %v252 = vld [vmem:[%s3] sm:$0x3]
        %v254 = vperm.slane %v252, 0
        %v255 = vperm.slane %v252, 1
        %vm258 = vcmask 195584
        %v260 = vsel %vm258, %v244, 0
        %v263 = vsel %vm258, %v245, 0
        %265 = vmatpush.msra.mxu0 0.0
        %266 = vmatpush.msra.mxu0 0.0
        %267 = vmatpush.msra.mxu0 0.0
        %268 = vmatpush.msra.mxu0 0.0
        %269 = vmatpush.msra.mxu0 0.0
        %270 = vmatpush.msra.mxu0 0.0
        %271 = vmatpush.msra.mxu0 0.0
        %272 = vmatpush.msra.mxu0 0.0
        %273 = vmatpush.msra.mxu0 0.0
        %274 = vmatpush.msra.mxu0 0.0
        %275 = vmatpush.msra.mxu0 0.0
        %276 = vmatpush.msra.mxu0 0.0
        %277 = vmatpush.msra.mxu0 0.0
        %278 = vmatpush.msra.mxu0 %v250
        %279 = vmatpush.msra.mxu0 %v248
        %280 = vmatpush.msra.mxu0 %v246
        %281 = vmatmul.f32.gmra.mxu0 %v260
        %v282 = vpop.f32.mrf.mxu0
        %v283 = vadd.f32 %v254, %v282
        %284 = vmatmul.f32.gmra.mxu0 %v263
        %v285 = vpop.f32.mrf.mxu0
        %v286 = vadd.f32 %v254, %v285
        %287 = vdwg.mxu0
        %288 = vmatpush.msra.mxu0 0.0
        %289 = vmatpush.msra.mxu0 0.0
        %290 = vmatpush.msra.mxu0 0.0
        %291 = vmatpush.msra.mxu0 0.0
        %292 = vmatpush.msra.mxu0 0.0
        %293 = vmatpush.msra.mxu0 0.0
        %294 = vmatpush.msra.mxu0 0.0
        %295 = vmatpush.msra.mxu0 0.0
        %296 = vmatpush.msra.mxu0 0.0
        %297 = vmatpush.msra.mxu0 0.0
        %298 = vmatpush.msra.mxu0 0.0
        %299 = vmatpush.msra.mxu0 0.0
        %300 = vmatpush.msra.mxu0 0.0
        %301 = vmatpush.msra.mxu0 %v251
        %302 = vmatpush.msra.mxu0 %v249
        %303 = vmatpush.msra.mxu0 %v247
        %304 = vmatmul.f32.gmra.mxu0 %v260
        %v305 = vpop.f32.mrf.mxu0
        %v306 = vadd.f32 %v255, %v305
        %307 = vmatmul.f32.gmra.mxu0 %v263
        %v308 = vpop.f32.mrf.mxu0
        %v309 = vadd.f32 %v255, %v308
        %310 = vdwg.mxu0
        %v311 = vxor.u32 %v306, 2147483648
        %v312 = vxor.u32 %v309, 2147483648
        %v313 = vmul.f32 %v311, 1.442695
        %v314 = vpow.pop %v313
        %v315 = vmul.f32 %v312, 1.442695
        %v316 = vpow.pop %v315
        %v317 = vadd.f32 %v314, 1.0
        %v318 = vadd.f32 %v316, 1.0
        %v319 = vrcp.pop %v317
        %v320 = vmul.f32 %v317, %v319
        %v321 = vsub.f32 1.0, %v320
        %v322 = vmul.f32 %v319, %v321
        %v323 = vadd.f32 %v319, %v322
        %vm324 = vweird.f32 %v317
        %vm325 = vweird.f32 %v319
        %vm326 = vmor %vm324, %vm325
        %v327 = vsel %vm326, %v319, %v323
        %v328 = vand.u32 2147483647, %v317
        %vm329 = vcmp.eq.f32.partialorder %v328, 8.507059e+37
        %v330 = vand.u32 %v317, 2147483648
        %v331 = vor.u32 1.1754944e-38, %v330
        %v332 = vsel %vm329, %v331, %v327
        %v333 = vmul.f32 1.0, %v332
        %v334 = vrcp.pop %v318
        %v335 = vmul.f32 %v318, %v334
        %v336 = vsub.f32 1.0, %v335
        %v337 = vmul.f32 %v334, %v336
        %v338 = vadd.f32 %v334, %v337
        %vm339 = vweird.f32 %v318
        %vm340 = vweird.f32 %v334
        %vm341 = vmor %vm339, %vm340
        %v342 = vsel %vm341, %v334, %v338
        %v343 = vand.u32 2147483647, %v318
        %vm344 = vcmp.eq.f32.partialorder %v343, 8.507059e+37
        %v345 = vand.u32 %v318, 2147483648
        %v346 = vor.u32 1.1754944e-38, %v345
        %v347 = vsel %vm344, %v346, %v342
        %v348 = vmul.f32 1.0, %v347
        %v351 = vsub.f32 %v283, %v219
        %v352 = vsub.f32 %v286, %v221
        %v353 = vmul.f32 %v333, %v351
        %v354 = vmul.f32 %v348, %v352
        %vm357 = vcmask 1040384
        %v358 = vrot.slane %v353, 7
        %v359 = vrot.slane %v354, 7
        %v360 = vsel %vm357, %v358, %v359
        %v364 = vadd.f32 %v210, %v358
        %v365 = vadd.f32 %v211, %v360
        %v366 = vadd.f32 %v212, %v359
        %v370 = vrot.slane %v364, 1
        %v371 = vrot.slane %v365, 1
        %v372 = vsel %vm216, %v370, %v371
        %v373 = vrot.slane %v366, 1
        %v374 = vsel %vm216, %v371, %v373
        %377 = vxpose.xlu0.b32.start [1/16] %v372, 128
        %378 = vxpose.xlu0.b32.cont [2/16] %v374, 128
        %379 = vxpose.xlu0.b32.cont [3/16] 0.0, 128
        %380 = vxpose.xlu0.b32.cont [4/16] 0.0, 128
        %381 = vxpose.xlu0.b32.cont [5/16] 0.0, 128
        %382 = vxpose.xlu0.b32.cont [6/16] 0.0, 128
        %383 = vxpose.xlu0.b32.cont [7/16] 0.0, 128
        %384 = vxpose.xlu0.b32.cont [8/16] 0.0, 128
        %385 = vxpose.xlu0.b32.cont [9/16] 0.0, 128
        %386 = vxpose.xlu0.b32.cont [10/16] 0.0, 128
        %387 = vxpose.xlu0.b32.cont [11/16] 0.0, 128
        %388 = vxpose.xlu0.b32.cont [12/16] 0.0, 128
        %389 = vxpose.xlu0.b32.cont [13/16] 0.0, 128
        %390 = vxpose.xlu0.b32.cont [14/16] 0.0, 128
        %391 = vxpose.xlu0.b32.cont [15/16] 0.0, 128
        %392 = vxpose.xlu0.b32.end [16/16] 0.0, 128
        %v393 = vpop.trf.xlu0
        %v394 = vpop.trf.xlu0
        %v395 = vpop.trf.xlu0
        %v396 = vpop.trf.xlu0
        %v397 = vpop.trf.xlu0
        %v398 = vpop.trf.xlu0
        %v399 = vpop.trf.xlu0
        %v400 = vpop.trf.xlu0
        %v401 = vpop.trf.xlu0
        %v402 = vpop.trf.xlu0
        %v403 = vpop.trf.xlu0
        %v404 = vpop.trf.xlu0
        %v405 = vpop.trf.xlu0
        %v406 = vpop.trf.xlu0
        %v407 = vpop.trf.xlu0
        %v408 = vpop.trf.xlu0
        %v409 = vld [vmem:[%s209] sm:$0x1]
        %v411 = vperm.slane %v409, 0
        %v413 = vmul.f32 %v393, %v411
        %414 = vst.msk [vmem:[%s201] sm:$0xff] %vm243, %v413
        %s415 = sand.u32 %s120, 1
        %s416 = scalar_lea.sflag [#allocation3], %s415
        %s417 = sand.u32 %s120, 1
        %s418 = smul.addr %s417, 8
        %s419 = scalar_lea.vmem [#allocation2], %s418
        // Predicated region
        $region37: #{tpu_custom_call.1} parent=35 // pred_check
          %p420 = pneg %p130
        $region38: #{tpu_custom_call.1} parent=35 // pred_check_branch
          %422 = sbr.rel (%p420) target = $region40
        $region39: #{tpu_custom_call.1} parent=35 // pred_region
          %424 = vsyncadd %s416, 0
          %s425 = smul.addr %s18, 8
          %s426 = scalar_lea.hbm %s4, %s425
          %s428 = sshll.u32 %s419, 4
          %s429 = int_to_ptr.vmem [resolvable:$true] %s428
          %s430 = sshll.u32 %s426, 4
          %s431 = int_to_ptr.hbm [resolvable:$true] %s430
          %433 = dma.vmem_to_hbm [thread:$0]  %s429, 128, %s431, %s416
        $region40: #{tpu_custom_call.1} parent=35 // pred_fallthru
          _
      $region36: #{tpu_custom_call.1} parent=5 // pred_fallthru
        _
      %p434 = scmp.le.s32.totalorder 2, %s13
      // Predicated region
      $region41: #{tpu_custom_call.1} parent=5 // pred_check
        %p435 = pneg %p434
      $region42: #{tpu_custom_call.1} parent=5 // pred_check_branch
        %437 = sbr.rel (%p435) target = $region44
      $region43: #{tpu_custom_call.1} parent=5 // pred_region
        %s438 = ssub.s32 %s13, 2
        // Predicated region
        $region45: #{tpu_custom_call.1} parent=43 // pred_check
          %p439 = pneg %p136
        $region46: #{tpu_custom_call.1} parent=43 // pred_check_branch
          %441 = sbr.rel (%p439) target = $region48
        $region47: #{tpu_custom_call.1} parent=43 // pred_region
          %s442 = sand.u32 %s121, 1
          %s443 = scalar_lea.sflag [#allocation3], %s442
          %s444 = sand.u32 %s121, 1
          %s445 = smul.addr %s444, 8
          %s446 = scalar_lea.vmem [#allocation2], %s445
          %448 = dma.done %s443, 128
        $region48: #{tpu_custom_call.1} parent=43 // pred_fallthru
          _
      $region44: #{tpu_custom_call.1} parent=5 // pred_fallthru
        _
    $region6: #{tpu_custom_call.1} parent=1 // loop_footer
      %s17 = sadd.s32 1, %s13
    $region7: #{tpu_custom_call.1} parent=1 // loop_footer_branch
      %12 = sbr.rel target = $region3
    $region8: #{tpu_custom_call.1} parent=1 // loop_exit
      _
    %449 = vsyncpa [#allocation3], 1
    %s450 = scalar_lea.sflag [#allocation3], 1
    %451 = vsyncpa %s450, 1

</llo_original>
